<compile_context>
chip_gen: v6e
topology: v6e:2x2x1
jax: 0.10.0
libtpu: 0.0.40
codegen_flags: <defaults>
</compile_context>

<pallas_src>
import functools

import jax
import jax.numpy as jnp
import numpy as np
from jax.experimental import pallas as pl
from jax.experimental.pallas import tpu as pltpu


# Rows of the emission processed per grid step.  Large tiles amortize the
# ~0.35 us per-step pipeline overhead and keep the HBM DMA engine busy;
# 1024 rows stays comfortably inside the scoped-VMEM budget on v5e / v6e /
# v7x even with the 32 -> 128 lane padding of the f32 block (see the
# vmem_limit computation below: ~2 MiB total at TILE_T = 1024).
_DEFAULT_TILE_T = 1024
_LANE = 128
_SUBLANE = 8


def _argmax_kernel(em_ref, idx_ref):
    """Per-tile argmax over the label (lane) axis.

    em_ref:  (TILE_T, L) logits
    idx_ref: (TILE_T, 1) int32 argmax indices (first occurrence on ties,
             matching torch / numpy argmax).
    """
    em = em_ref[...]
    tile_t, num_label = em.shape

    # argmax = min lane-index among positions equal to the row max.
    # Mosaic masks the physically padded lanes (L < 128) out of both the
    # row-max and the min reduction, so no explicit lane guard is needed.
    lane_iota = jax.lax.broadcasted_iota(jnp.int32, (tile_t, num_label), 1)
    row_max = jnp.max(em, axis=-1, keepdims=True)                    # (TILE_T, 1)
    cand = jnp.where(em == row_max, lane_iota, jnp.int32(num_label))
    idx_ref[...] = jnp.min(cand, axis=-1, keepdims=True)             # (TILE_T, 1) i32


def _round_up(x: int, m: int) -> int:
    return (x + m - 1) // m * m


@functools.partial(jax.jit, static_argnames=("tile_t",))
def ctc_argmax(emission: jax.Array, tile_t: int = _DEFAULT_TILE_T) -> jax.Array:
    """Per-timestep argmax of a [T, L] emission; returns int32 [T, 1]."""
    T, L = emission.shape
    # Short sequences: a single (row-padded) block.  Long sequences: tile.
    tile_t = min(tile_t, _round_up(T, _SUBLANE))
    grid = (pl.cdiv(T, tile_t),)

    # VMEM budget: input block lane-padded to 128 lanes plus the (TILE_T, 1)
    # int32 output block (also lane-padded), each double-buffered by the
    # Pallas pipeline.  Request that plus headroom, capped at 32 MiB so it
    # is valid on every generation (v7x has only 64 MiB physical VMEM).
    itemsize = max(jnp.dtype(emission.dtype).itemsize, 4)
    per_step = 2 * tile_t * _LANE * itemsize          # one input + one output block
    vmem_limit = int(min(max(4 * per_step, 4 << 20), 32 << 20))

    return pl.pallas_call(
        _argmax_kernel,
        grid=grid,
        in_specs=[pl.BlockSpec((tile_t, L), lambda i: (i, 0))],
        out_specs=pl.BlockSpec((tile_t, 1), lambda i: (i, 0)),
        out_shape=jax.ShapeDtypeStruct((T, 1), jnp.int32),
        compiler_params=pltpu.CompilerParams(
            dimension_semantics=("parallel",),   # independent tiles: v7x megacore
            vmem_limit_bytes=vmem_limit,
        ),
    )(emission)


class GreedyCTCDecoder:
    """JAX/Pallas port of the PyTorch GreedyCTCDecoder."""

    def __init__(self, labels, blank: int = 0):
        self.labels = labels
        self.blank = blank

    def __call__(self, emission: jax.Array) -> str:
        # Device: argmax over labels (the only heavy op).  Accepts bf16 or
        # f32 emissions as-is — no wrapper upcast.
        idx = ctc_argmax(emission)
        idx_np = np.asarray(jax.block_until_ready(idx)).reshape(-1)  # single D2H copy
        # Host glue (vectorised): unique_consecutive + blank removal + join.
        if idx_np.size == 0:
            return ""
        keep = np.empty(idx_np.shape, dtype=bool)
        keep[0] = True
        keep[1:] = idx_np[1:] != idx_np[:-1]
        keep &= idx_np != self.blank
        return "".join(self.labels[int(i)] for i in idx_np[keep])


def _reference_decode(emission_np: np.ndarray, labels, blank: int) -> str:
    indices = np.argmax(emission_np, axis=-1)
    out, prev = [], None
    for i in indices:
        if i != prev and i != blank:
            out.append(labels[int(i)])
        prev = i
    return "".join(out)


if __name__ == "__main__":
    labels = "-abcdefghijklmnopqrstuvwxyz '.,?!"[:32]
    assert len(labels) == 32
    blank = 0
    decoder = GreedyCTCDecoder(labels, blank=blank)

    # Case 1: the toy shape from the module docstring (num_seq=8, num_label=32).
    em1 = jax.random.normal(jax.random.PRNGKey(0), (8, 32), dtype=jnp.float32)
    out1 = decoder(em1)
    ref1 = _reference_decode(np.asarray(em1), labels, blank)
    assert out1 == ref1, f"mismatch: kernel={out1!r} ref={ref1!r}"

    # Case 2: longer sequence with 128-row tiles — exercises the multi-step,
    # pipelined grid including a partial last block (300 = 128 + 128 + 44).
    em2 = jax.random.normal(jax.random.PRNGKey(1), (300, 32), dtype=jnp.float32)
    idx2 = jax.block_until_ready(ctc_argmax(em2, tile_t=128))
    np.testing.assert_array_equal(
        np.asarray(idx2).reshape(-1), np.argmax(np.asarray(em2), axis=-1)
    )
    out2 = decoder(em2)
    ref2 = _reference_decode(np.asarray(em2), labels, blank)
    assert out2 == ref2, f"mismatch: kernel={out2!r} ref={ref2!r}"

    print("KERNEL_OK")
</pallas_src>

<mosaic_0001>
module attributes {stable_mosaic.version = 11 : i64} {
  func.func @_argmax_kernel(%arg0: i32, %arg1: memref<8x32xf32, #tpu.memory_space<vmem>>, %arg2: memref<8x1xi32, #tpu.memory_space<vmem>>) attributes {dimension_semantics = [#tpu.dimension_semantics<parallel>], iteration_bounds = array<i64: 1>, scalar_prefetch = 0 : i64, scratch_operands = 0 : i64, tpu.core_type = #tpu.core_type<tc>, window_params = [{transform_indices = @transform_0, window_bounds = array<i64: 8, 32>}, {transform_indices = @transform_1, window_bounds = array<i64: 8, 1>}]} {
    %c0 = arith.constant 0 : index
    %c0_0 = arith.constant 0 : index
    %0 = vector.load %arg1[%c0, %c0_0] : memref<8x32xf32, #tpu.memory_space<vmem>>, vector<8x32xf32>
    %1 = tpu.iota {dimensions = array<i32: 1>} : vector<8x32xi32>
    %cst = arith.constant dense<0xFF800000> : vector<8xf32>
    %2 = vector.multi_reduction <maximumf>, %0, %cst [1] : vector<8x32xf32> to vector<8xf32>
    %3 = vector.shape_cast %2 : vector<8xf32> to vector<8x1xf32>
    %4 = vector.broadcast %3 : vector<8x1xf32> to vector<8x32xf32>
    %5 = arith.cmpf oeq, %0, %4 : vector<8x32xf32>
    %c32_i32 = arith.constant 32 : i32
    %6 = vector.broadcast %c32_i32 : i32 to vector<8x32xi32>
    %7 = arith.select %5, %1, %6 : vector<8x32xi1>, vector<8x32xi32>
    %cst_1 = arith.constant dense<2147483647> : vector<8xi32>
    %8 = vector.multi_reduction <minsi>, %7, %cst_1 [1] : vector<8x32xi32> to vector<8xi32>
    %9 = vector.shape_cast %8 : vector<8xi32> to vector<8x1xi32>
    %c0_2 = arith.constant 0 : index
    %c0_3 = arith.constant 0 : index
    %10 = vector.load %arg2[%c0_2, %c0_3] : memref<8x1xi32, #tpu.memory_space<vmem>>, vector<8x1xi32>
    tpu.vector_store %arg2[%c0_2, %c0_3], %9 {strides = array<i32>} : memref<8x1xi32, #tpu.memory_space<vmem>>, vector<8x1xi32>,
    return
  }
  func.func @transform_0(%arg0: i32) -> (i32, i32) {
    %c0_i32 = arith.constant 0 : i32
    %c0_i32_0 = arith.constant 0 : i32
    return %arg0, %c0_i32 : i32, i32
  }
  func.func @transform_1(%arg0: i32) -> (i32, i32) {
    %c0_i32 = arith.constant 0 : i32
    %c0_i32_0 = arith.constant 0 : i32
    return %arg0, %c0_i32 : i32, i32
  }
}

</mosaic_0001>

<llo_original>
// kernel: ctc_argmax.1
$region0: #{ctc_argmax.1}
  #allocation0 [shape = 'u32[]', space=smem, size = 0x4, offset = 0x4, fixed_abs, tag = 'smem constant byte address 0x4 - core index']
  #allocation1 [shape = 'u32[144,128]{1,0:T(1,128)}', space=vmem, size = 0x12000, scoped, tag = 'internal scratch']
  %s0 = inlined_call_operand.hbm [shape: f32[8,32], index: 0, kind: input, shape index: {}]
  %s1 = inlined_call_operand.vmem [shape: s32[8,1], index: 1, kind: output, shape index: {}]
  %s2 = sld [smem:[#allocation0]]
  $region18: #{ctc_argmax.1} parent=0
    _
  %s4 = ssub.s32 1, %s2
  %s5 = scalar_select 0, %s4, %s2
  $region1: #{ctc_argmax.1} parent=0
    #allocation2 [shape = 'u8[4096]{0}', space=vmem, size = 0x1000, scoped, tag = 'input window, operand 0, single buffered']
    #allocation3 [shape = 's32[1]{0}', space=sflag, size = 0x4, scoped, tag = 'scoped memory for ctc_argmax.1']
    %6 = vsyncpa [#allocation3], 0
    // Predicated region
    $region2: #{ctc_argmax.1} parent=1 // pred_check
      _
    $region3: #{ctc_argmax.1} parent=1 // pred_check_branch
      %8 = sbr.rel (0) target = $region5
    $region4: #{ctc_argmax.1} parent=1 // pred_region
      %s10 = ssub.s32 128, 128
      %11 = vsyncadd [#allocation3], %s10
      %s13 = sshll.u32 [#allocation2], 4
      %s14 = int_to_ptr.vmem [resolvable:$true] %s13
      %16 = dma.hbm_to_vmem [thread:$0]  %s0, 128, %s14, [#allocation3]
    $region5: #{ctc_argmax.1} parent=1 // pred_fallthru
      _
    // Predicated region
    $region6: #{ctc_argmax.1} parent=1 // pred_check
      _
    $region7: #{ctc_argmax.1} parent=1 // pred_check_branch
      %18 = sbr.rel (0) target = $region9
    $region8: #{ctc_argmax.1} parent=1 // pred_region
      %19 = dma.done [#allocation3], 128
    $region9: #{ctc_argmax.1} parent=1 // pred_fallthru
      _
    %v20 = vld [vmem:[#allocation2] sm:$0xff]
    %v21 = vlaneseq
    %v22 = vand.u32 %v21, 127
    %vm23 = vcmask 261120
    %v24 = vsel %vm23, %v20, -inf
    %25 = vmax.xlane.f32.xlu0 %v24
    %v26 = vpop.xlane.xlu0 %25
    %vm27 = vcmp.eq.f32.partialorder %v20, %v26
    %v28 = vsel %vm27, %v22, 32
    %v29 = vsel %vm23, %v28, 2147483647
    %v30 = vand.u32 %v29, 65535
    %v31 = vshra.s32 %v29, 16
    %v32 = vcvt.s32.f32 %v30
    %v33 = vcvt.s32.f32 %v31
    %34 = vmin.xlane.f32.xlu0 %v33
    %v35 = vpop.xlane.xlu0 %34
    %vm36 = vcmp.eq.f32.partialorder %v33, %v35
    %v37 = vsel %vm36, %v32, inf
    %38 = vmin.xlane.f32.xlu0 %v37
    %v39 = vpop.xlane.xlu0 %38
    %v40 = vcvt.f32.s32 %v39
    %v41 = vcvt.f32.s32 %v35
    %v42 = vshll.u32 %v41, 16
    %v43 = vadd.s32 %v42, %v40
    %vm44 = vcmask 7168
    %45 = vst.msk [vmem:[%s1] sm:$0xff] %vm44, %v43
    // Predicated region
    $region10: #{ctc_argmax.1} parent=1 // pred_check
      _
    $region11: #{ctc_argmax.1} parent=1 // pred_check_branch
      %47 = sbr.rel (0) target = $region13
    $region12: #{ctc_argmax.1} parent=1 // pred_region
      _
    $region13: #{ctc_argmax.1} parent=1 // pred_fallthru
      _
    // Predicated region
    $region14: #{ctc_argmax.1} parent=1 // pred_check
      _
    $region15: #{ctc_argmax.1} parent=1 // pred_check_branch
      %49 = sbr.rel (0) target = $region17
    $region16: #{ctc_argmax.1} parent=1 // pred_region
      _
    $region17: #{ctc_argmax.1} parent=1 // pred_fallthru
      _
    %50 = vsyncpa [#allocation3], 1

</llo_original>
